<compile_context>
chip_gen: v6e
topology: v6e:2x2x1
jax: 0.10.0
libtpu: 0.0.40
codegen_flags: <defaults>
</compile_context>

<pallas_src>
import functools

import jax
import jax.numpy as jnp
from jax import lax
from jax.experimental import pallas as pl
from jax.experimental.pallas import tpu as pltpu


def _min_value(dtype):
    dtype = jnp.dtype(dtype)
    if jnp.issubdtype(dtype, jnp.floating):
        return float(jnp.finfo(dtype).min)
    return int(jnp.iinfo(dtype).min)


def _largest_divisor_leq(n, cap):
    cap = int(max(1, min(n, cap)))
    for d in range(cap, 0, -1):
        if n % d == 0:
            return d
    return 1


def _concat_pool_kernel(*refs, n_sub, inv_area, has_pad):
    # refs: x_ref [, row_mask_ref, col_mask_ref], out_ref
    if has_pad:
        x_ref, row_ref, col_ref, out_ref = refs
    else:
        x_ref, out_ref = refs

    x = x_ref[...]                       # (Nb, hb, s, Wout, s*C)
    c = out_ref.shape[-1]                # C

    # ---- max path (additive dtype-min border mask recreates -inf padding) ----
    xm = x
    if has_pad:
        xm = xm + row_ref[...][None] + col_ref[...][None]
    m = jnp.max(xm, axis=2)              # (Nb, hb, Wout, s*C)   pool over H sub-window

    # ---- avg path (accumulate in f32) ----
    a = jnp.sum(x.astype(jnp.float32), axis=2)    # (Nb, hb, Wout, s*C)

    # Pool over the W sub-window: static, contiguous lane slices of width C.
    mo = m[..., 0:c]
    ao = a[..., 0:c]
    for dw in range(1, n_sub):
        mo = jnp.maximum(mo, m[..., dw * c:(dw + 1) * c])
        ao = ao + a[..., dw * c:(dw + 1) * c]

    out_ref[:, 0] = mo.astype(out_ref.dtype)                 # max-pool half
    out_ref[:, 1] = (ao * inv_area).astype(out_ref.dtype)    # avg-pool half


def _concat_pool2d_pallas(x, ks, p):
    """Fast path: kernel_size == stride (non-overlapping windows), NCHW in/out."""
    n, ch, h, w = x.shape
    s = ks
    hp, wp = h + 2 * p, w + 2 * p
    h_out = (hp - ks) // s + 1
    w_out = (wp - ks) // s + 1
    dtype = x.dtype
    itemsize = jnp.dtype(dtype).itemsize

    # NCHW -> NHWC (layout plumbing so channels live on the lane axis), zero-pad once.
    xt = jnp.transpose(x, (0, 2, 3, 1))
    if p > 0:
        xt = jnp.pad(xt, ((0, 0), (p, p), (p, p), (0, 0)))
    # Crop to exact window coverage and expose the (s, s) sub-window structure as a
    # free row-major view: (N, Hout, s, Wout, s*C).
    xt = xt[:, :h_out * s, :w_out * s, :]
    xr = xt.reshape(n, h_out, s, w_out, s * ch)

    # Block sizing: full channel/W extent per step; tile batch & output rows so one
    # input block stays <= ~4 MiB (large DMAs, safe under every generation's VMEM).
    budget = 4 * 1024 * 1024
    row_bytes = s * w_out * s * ch * itemsize
    hb = _largest_divisor_leq(h_out, max(1, budget // max(1, row_bytes)))
    if hb == h_out:
        nb = _largest_divisor_leq(n, max(1, budget // max(1, h_out * row_bytes)))
    else:
        nb = 1
    # Keep >=2 grid steps when possible so v7x can shard across both TensorCores.
    if n > 1 and (n // nb) * (h_out // hb) < 2:
        nb = _largest_divisor_leq(n, n // 2)
    grid = (n // nb, h_out // hb)

    in_arrays = [xr]
    in_specs = [
        pl.BlockSpec((nb, hb, s, w_out, s * ch), lambda i, j: (i, j, 0, 0, 0)),
    ]
    if p > 0:
        mn = _min_value(dtype)
        hi = jnp.arange(h_out * s).reshape(h_out, s)
        row_mask = jnp.where((hi < p) | (hi >= p + h), mn, 0).astype(dtype)
        row_mask = row_mask.reshape(h_out, s, 1, 1)
        wi = jnp.arange(w_out * s).reshape(w_out, s)
        col_mask = jnp.where((wi < p) | (wi >= p + w), mn, 0).astype(dtype)
        col_mask = jnp.broadcast_to(col_mask[:, :, None], (w_out, s, ch))
        col_mask = col_mask.reshape(1, 1, w_out, s * ch)
        in_arrays += [row_mask, col_mask]
        in_specs += [
            pl.BlockSpec((hb, s, 1, 1), lambda i, j: (j, 0, 0, 0)),
            pl.BlockSpec((1, 1, w_out, s * ch), lambda i, j: (0, 0, 0, 0)),
        ]

    kernel = functools.partial(
        _concat_pool_kernel,
        n_sub=s,
        inv_area=1.0 / float(ks * ks),
        has_pad=(p > 0),
    )

    out5 = pl.pallas_call(
        kernel,
        out_shape=jax.ShapeDtypeStruct((n, 2, h_out, w_out, ch), dtype),
        grid=grid,
        in_specs=in_specs,
        out_specs=pl.BlockSpec((nb, 2, hb, w_out, ch), lambda i, j: (i, 0, j, 0, 0)),
        compiler_params=pltpu.CompilerParams(
            dimension_semantics=("parallel", "parallel"),
        ),
    )(*in_arrays)

    # torch.cat([mp(x), ap(x)], dim=1): free leading-dim reshape after the transpose.
    return jnp.transpose(out5, (0, 1, 4, 2, 3)).reshape(n, 2 * ch, h_out, w_out)


def _concat_pool2d_fallback(x, ks, s, p):
    # TODO(synk): overlapping windows (stride != kernel_size) use a plain-JAX
    # reduce_window fallback rather than the Pallas fast path.
    pad = ((0, 0), (0, 0), (p, p), (p, p))
    mx = lax.reduce_window(x, jnp.asarray(_min_value(x.dtype), x.dtype), lax.max,
                           (1, 1, ks, ks), (1, 1, s, s), pad)
    sm = lax.reduce_window(x, jnp.asarray(0, x.dtype), lax.add,
                           (1, 1, ks, ks), (1, 1, s, s), pad)
    av = (sm / float(ks * ks)).astype(x.dtype)
    return jnp.concatenate([mx, av], axis=1)


def concat_pool2d(x, kernel_size, stride=None, padding=0, ceil_mode=False):
    """ConcatPool2d forward: cat([MaxPool2d(x), AvgPool2d(x)], dim=1). x is NCHW."""
    if ceil_mode:
        # TODO(synk): ceil_mode=True output-size rule (PyTorch ceil division) not implemented.
        raise NotImplementedError("ceil_mode=True is not supported")
    ks = int(kernel_size)
    s = ks if stride is None else int(stride)
    p = int(padding)
    if s == ks:
        return _concat_pool2d_pallas(x, ks, p)
    return _concat_pool2d_fallback(x, ks, s, p)


if __name__ == "__main__":
    key = jax.random.PRNGKey(0)
    # Small NCHW input consistent with a conv feature map.
    x = jax.random.normal(key, (2, 4, 16, 16), dtype=jnp.float32)

    # ConcatPool2d(kernel_size=2) -> MaxPool2d(2) & AvgPool2d(2), stride=2, padding=0.
    out = concat_pool2d(x, kernel_size=2, stride=None, padding=0, ceil_mode=False)
    out = jax.block_until_ready(out)

    assert out.shape == (2, 8, 8, 8), out.shape
    assert out.dtype == x.dtype

    # Sanity check against a pure-JAX reference (window reshape).
    xr = x.reshape(2, 4, 8, 2, 8, 2)
    ref = jnp.concatenate([xr.max(axis=(3, 5)), xr.mean(axis=(3, 5))], axis=1)
    assert jnp.allclose(out, ref, atol=1e-5, rtol=1e-5)

    print("KERNEL_OK")
</pallas_src>

<mosaic_0001>
module attributes {stable_mosaic.version = 11 : i64} {
  func.func @_concat_pool_kernel(%arg0: i32, %arg1: i32, %arg2: memref<1x8x2x8x8xf32, #tpu.memory_space<vmem>>, %arg3: memref<1x2x8x8x4xf32, #tpu.memory_space<vmem>>) attributes {dimension_semantics = [#tpu.dimension_semantics<parallel>, #tpu.dimension_semantics<parallel>], iteration_bounds = array<i64: 2, 1>, scalar_prefetch = 0 : i64, scratch_operands = 0 : i64, tpu.core_type = #tpu.core_type<tc>, window_params = [{transform_indices = @transform_0, window_bounds = array<i64: 1, 8, 2, 8, 8>}, {transform_indices = @transform_1, window_bounds = array<i64: 1, 2, 8, 8, 4>}]} {
    %c0 = arith.constant 0 : index
    %c0_0 = arith.constant 0 : index
    %c0_1 = arith.constant 0 : index
    %c0_2 = arith.constant 0 : index
    %c0_3 = arith.constant 0 : index
    %0 = vector.load %arg2[%c0, %c0_0, %c0_1, %c0_2, %c0_3] : memref<1x8x2x8x8xf32, #tpu.memory_space<vmem>>, vector<1x8x2x8x8xf32>
    %cst = arith.constant dense<0xFF800000> : vector<1x8x8x8xf32>
    %1 = vector.multi_reduction <maximumf>, %0, %cst [2] : vector<1x8x2x8x8xf32> to vector<1x8x8x8xf32>
    %cst_4 = arith.constant dense<0.000000e+00> : vector<1x8x8x8xf32>
    %2 = vector.multi_reduction <add>, %0, %cst_4 [2] : vector<1x8x2x8x8xf32> to vector<1x8x8x8xf32>
    %3 = vector.extract_strided_slice %1 {offsets = [0, 0, 0, 0], sizes = [1, 8, 8, 4], strides = [1, 1, 1, 1]} : vector<1x8x8x8xf32> to vector<1x8x8x4xf32>
    %4 = vector.extract_strided_slice %2 {offsets = [0, 0, 0, 0], sizes = [1, 8, 8, 4], strides = [1, 1, 1, 1]} : vector<1x8x8x8xf32> to vector<1x8x8x4xf32>
    %5 = vector.extract_strided_slice %1 {offsets = [0, 0, 0, 4], sizes = [1, 8, 8, 4], strides = [1, 1, 1, 1]} : vector<1x8x8x8xf32> to vector<1x8x8x4xf32>
    %6 = arith.maximumf %3, %5 : vector<1x8x8x4xf32>
    %7 = vector.extract_strided_slice %2 {offsets = [0, 0, 0, 4], sizes = [1, 8, 8, 4], strides = [1, 1, 1, 1]} : vector<1x8x8x8xf32> to vector<1x8x8x4xf32>
    %8 = arith.addf %4, %7 : vector<1x8x8x4xf32>
    %c0_5 = arith.constant 0 : index
    %c0_6 = arith.constant 0 : index
    %c0_7 = arith.constant 0 : index
    %c0_8 = arith.constant 0 : index
    %c0_9 = arith.constant 0 : index
    %9 = vector.load %arg3[%c0_5, %c0_6, %c0_7, %c0_8, %c0_9] : memref<1x2x8x8x4xf32, #tpu.memory_space<vmem>>, vector<1x1x8x8x4xf32>
    %10 = vector.shape_cast %9 : vector<1x1x8x8x4xf32> to vector<1x8x8x4xf32>
    %11 = vector.shape_cast %6 : vector<1x8x8x4xf32> to vector<1x1x8x8x4xf32>
    tpu.vector_store %arg3[%c0_5, %c0_6, %c0_7, %c0_8, %c0_9], %11 {strides = array<i32>} : memref<1x2x8x8x4xf32, #tpu.memory_space<vmem>>, vector<1x1x8x8x4xf32>,
    %cst_10 = arith.constant 2.500000e-01 : f32
    %12 = vector.broadcast %cst_10 : f32 to vector<1x8x8x4xf32>
    %13 = arith.mulf %8, %12 : vector<1x8x8x4xf32>
    %c0_11 = arith.constant 0 : index
    %c1 = arith.constant 1 : index
    %c0_12 = arith.constant 0 : index
    %c0_13 = arith.constant 0 : index
    %c0_14 = arith.constant 0 : index
    %14 = vector.load %arg3[%c0_11, %c1, %c0_12, %c0_13, %c0_14] : memref<1x2x8x8x4xf32, #tpu.memory_space<vmem>>, vector<1x1x8x8x4xf32>
    %15 = vector.shape_cast %14 : vector<1x1x8x8x4xf32> to vector<1x8x8x4xf32>
    %16 = vector.shape_cast %13 : vector<1x8x8x4xf32> to vector<1x1x8x8x4xf32>
    tpu.vector_store %arg3[%c0_11, %c1, %c0_12, %c0_13, %c0_14], %16 {strides = array<i32>} : memref<1x2x8x8x4xf32, #tpu.memory_space<vmem>>, vector<1x1x8x8x4xf32>,
    return
  }
  func.func @transform_0(%arg0: i32, %arg1: i32) -> (i32, i32, i32, i32, i32) {
    %c0_i32 = arith.constant 0 : i32
    %c0_i32_0 = arith.constant 0 : i32
    %c0_i32_1 = arith.constant 0 : i32
    %c0_i32_2 = arith.constant 0 : i32
    return %arg0, %arg1, %c0_i32, %c0_i32_0, %c0_i32_1 : i32, i32, i32, i32, i32
  }
  func.func @transform_1(%arg0: i32, %arg1: i32) -> (i32, i32, i32, i32, i32) {
    %c0_i32 = arith.constant 0 : i32
    %c0_i32_0 = arith.constant 0 : i32
    %c0_i32_1 = arith.constant 0 : i32
    %c0_i32_2 = arith.constant 0 : i32
    return %arg0, %c0_i32, %arg1, %c0_i32_0, %c0_i32_1 : i32, i32, i32, i32, i32
  }
}

</mosaic_0001>

<llo_original>
// kernel: tpu_custom_call.1
$region0: #{tpu_custom_call.1}
  #allocation0 [shape = 'u32[]', space=smem, size = 0x4, offset = 0x4, fixed_abs, tag = 'smem constant byte address 0x4 - core index']
  #allocation1 [shape = 'u32[144,128]{1,0:T(1,128)}', space=vmem, size = 0x12000, scoped, tag = 'internal scratch']
  %s0 = inlined_call_operand.hbm [shape: f32[2,8,2,8,8], index: 0, kind: input, shape index: {}]
  %s1 = inlined_call_operand.vmem [shape: f32[2,2,8,8,4], index: 1, kind: output, shape index: {}]
  %s2 = sld [smem:[#allocation0]]
  $region41: #{tpu_custom_call.1} parent=0
    _
  %s4 = ssub.s32 1, %s2
  %s5 = scalar_select 0, %s4, %s2
  $region1: #{tpu_custom_call.1} parent=0
    #allocation2 [shape = 'u8[131072]{0}', space=vmem, size = 0x20000, scoped, tag = 'input window, operand 0']
    #allocation3 [shape = 's32[2]{0}', space=sflag, size = 0x8, scoped, tag = 'scoped memory for tpu_custom_call.1']
    %6 = vsyncpa [#allocation3], 0
    %s7 = scalar_lea.sflag [#allocation3], 1
    %8 = vsyncpa %s7, 0
    loop: start=0, step=1, limit=4
    $region2: #{tpu_custom_call.1} parent=1 // loop_pre_header
      _
    $region3: #{tpu_custom_call.1} parent=1 // loop_header
      %s10 = sphi 0, %s14
      %p11 = scmp.ge.s32.totalorder %s10, 4
      %s17 = sphi 0, %s29
      %s18 = sphi 0, %s25
      %s19 = sphi 0, %s17
      %s20 = sphi 0, %s18
      %s21 = sphi 0, %s19
      %s22 = sphi 0, %s20
      %s34 = sphi 0, %s36
      %s37 = sphi 0, %s34
      %s38 = sphi 0, %s37
      %s54 = sphi 0, %s38
      %s62 = sphi 0, %s64
      %s65 = sphi 0, %s62
      %s66 = sphi 0, %s65
      %s82 = sphi 0, %s66
    $region4: #{tpu_custom_call.1} parent=1 // loop_header_branch
      %13 = sbr.rel (%p11) target = $region8
    $region5: #{tpu_custom_call.1} parent=1 // loop_body
      %s15 = ssub.s32 %s10, 1
      %s16 = ssub.s32 %s10, 2
      %s23 = sadd.s32 1, %s18
      %p24 = scmp.ge.s32.totalorder %s23, 1
      %s25 = scalar_select %p24, 0, %s23
      %s26 = sadd.s32 1, %s17
      %s27 = scalar_select %p24, %s26, %s17
      %p28 = scmp.ge.s32.totalorder %s27, 2
      %s29 = scalar_select %p28, 0, %s27
      %s30 = ssub.s32 %s17, %s29
      %s31 = ssub.s32 %s18, %s25
      %s32 = sor.u32 %s30, %s31
      %p33 = scmp.eq.s32.totalorder %s32, 0
      %s35 = sadd.s32 %s34, 1
      %s36 = scalar_select %p33, %s34, %s35
      %p39 = pneg %p33
      %p40 = scmp.eq.s32.totalorder %s10, 1
      %p41 = por %p39, %p40
      %p42 = scmp.ne.s32.totalorder %s34, %s37
      %p43 = scmp.eq.s32.totalorder %s10, 0
      %p44 = por %p42, %p43
      %p45 = scmp.ne.s32.totalorder %s34, %s37
      %p46 = scmp.eq.s32.totalorder %s15, 1
      %p47 = por %p45, %p46
      %p48 = scmp.ne.s32.totalorder %s37, %s38
      %p49 = scmp.eq.s32.totalorder %s15, 0
      %p50 = por %p48, %p49
      %p51 = scmp.ne.s32.totalorder %s37, %s38
      %p52 = scmp.eq.s32.totalorder %s16, 1
      %p53 = por %p51, %p52
      %p55 = scmp.ne.s32.totalorder %s38, %s54
      %p56 = scmp.eq.s32.totalorder %s16, 0
      %p57 = por %p55, %p56
      %s58 = ssub.s32 %s17, %s29
      %s59 = ssub.s32 %s18, %s25
      %s60 = sor.u32 %s58, %s59
      %p61 = scmp.eq.s32.totalorder %s60, 0
      %s63 = sadd.s32 %s62, 1
      %s64 = scalar_select %p61, %s62, %s63
      %p67 = pneg %p61
      %p68 = scmp.eq.s32.totalorder %s10, 1
      %p69 = por %p67, %p68
      %p70 = scmp.ne.s32.totalorder %s62, %s65
      %p71 = scmp.eq.s32.totalorder %s10, 0
      %p72 = por %p70, %p71
      %p73 = scmp.ne.s32.totalorder %s62, %s65
      %p74 = scmp.eq.s32.totalorder %s15, 1
      %p75 = por %p73, %p74
      %p76 = scmp.ne.s32.totalorder %s65, %s66
      %p77 = scmp.eq.s32.totalorder %s15, 0
      %p78 = por %p76, %p77
      %p79 = scmp.ne.s32.totalorder %s65, %s66
      %p80 = scmp.eq.s32.totalorder %s16, 1
      %p81 = por %p79, %p80
      %p83 = scmp.ne.s32.totalorder %s66, %s82
      %p84 = scmp.eq.s32.totalorder %s16, 0
      %p85 = por %p83, %p84
      %p86 = scmp.le.s32.totalorder 1, %s10
      %p87 = scmp.lt.s32.totalorder %s10, 3
      %p88 = pnand %p86, %p87
      %p89 = pneg %p88
      // Predicated region
      $region9: #{tpu_custom_call.1} parent=5 // pred_check
        _
      $region10: #{tpu_custom_call.1} parent=5 // pred_check_branch
        %91 = sbr.rel (%p88) target = $region12
      $region11: #{tpu_custom_call.1} parent=5 // pred_region
        %s92 = ssub.s32 %s10, 1
      $region12: #{tpu_custom_call.1} parent=5 // pred_fallthru
        _
      %p93 = scmp.lt.s32.totalorder %s10, 2
      // Predicated region
      $region13: #{tpu_custom_call.1} parent=5 // pred_check
        %p94 = pneg %p93
      $region14: #{tpu_custom_call.1} parent=5 // pred_check_branch
        %96 = sbr.rel (%p94) target = $region16
      $region15: #{tpu_custom_call.1} parent=5 // pred_region
        // Predicated region
        $region17: #{tpu_custom_call.1} parent=15 // pred_check
          %p97 = pneg %p44
        $region18: #{tpu_custom_call.1} parent=15 // pred_check_branch
          %99 = sbr.rel (%p97) target = $region20
        $region19: #{tpu_custom_call.1} parent=15 // pred_region
          %s100 = sand.u32 %s34, 1
          %s101 = scalar_lea.sflag [#allocation3], %s100
          %s102 = sand.u32 %s34, 1
          %s103 = smul.addr %s102, 128
          %s104 = scalar_lea.vmem [#allocation2], %s103
          %s105 = smul.u32 8, %s18
          %s107 = ssub.s32 2048, 2048
          %108 = vsyncadd %s101, %s107
          %s109 = smul.addr %s105, 2
          %s110 = smul.addr %s17, 16
          %s111 = sadd.s32 %s109, %s110
          %s112 = smul.addr %s111, 128
          %s113 = scalar_lea.hbm %s0, %s112
          %s114 = sshll.u32 %s104, 4
          %s115 = int_to_ptr.vmem [resolvable:$true] %s114
          %120 = dma.hbm_to_vmem [thread:$0]  %s113, 2048, %s115, %s101, 128, 128, 8
        $region20: #{tpu_custom_call.1} parent=15 // pred_fallthru
          _
      $region16: #{tpu_custom_call.1} parent=5 // pred_fallthru
        _
      %p121 = scmp.le.s32.totalorder 1, %s10
      %p122 = scmp.lt.s32.totalorder %s10, 3
      %p123 = pnand %p121, %p122
      %p124 = pneg %p123
      // Predicated region
      $region21: #{tpu_custom_call.1} parent=5 // pred_check
        _
      $region22: #{tpu_custom_call.1} parent=5 // pred_check_branch
        %126 = sbr.rel (%p123) target = $region24
      $region23: #{tpu_custom_call.1} parent=5 // pred_region
        %s127 = ssub.s32 %s10, 1
        %s128 = sand.u32 %s37, 1
        %s129 = scalar_lea.sflag [#allocation3], %s128
        %s130 = sand.u32 %s37, 1
        %s131 = smul.addr %s130, 128
        %s132 = scalar_lea.vmem [#allocation2], %s131
        // Predicated region
        $region25: #{tpu_custom_call.1} parent=23 // pred_check
          %p133 = pneg %p50
        $region26: #{tpu_custom_call.1} parent=23 // pred_check_branch
          %135 = sbr.rel (%p133) target = $region28
        $region27: #{tpu_custom_call.1} parent=23 // pred_region
          %136 = dma.done %s129, 2048
        $region28: #{tpu_custom_call.1} parent=23 // pred_fallthru
          _
        %s137 = sand.u32 %s37, 1
        %s138 = scalar_lea.sflag [#allocation3], %s137
        %s139 = sand.u32 %s37, 1
        %s140 = smul.addr %s139, 128
        %s141 = scalar_lea.vmem [#allocation2], %s140
        %p142 = pneg %p50
        %p143 = pneg %p47
        %p144 = pneg %p78
        %p145 = pneg %p75
        %s146 = smul.u32 8, %s20
        %p147 = scmp.lt.s32.totalorder %s19, 1
        %s148 = scalar_select %p147, %s19, 1
        %p149 = scmp.lt.s32.totalorder %s146, 7
        %s150 = scalar_select %p149, %s146, 7
        %s151 = smul.addr %s148, 16
        %s152 = sadd.s32 %s150, %s151
        %s153 = smul.addr %s152, 8
        %s154 = scalar_lea.vmem %s1, %s153
        %s155 = smul.u32 8, %s20
        %s156 = smul.u32 8, %s20
        %p157 = scmp.lt.s32.totalorder %s19, 1
        %s158 = scalar_select %p157, %s19, 1
        %p159 = scmp.lt.s32.totalorder %s156, 7
        %s160 = scalar_select %p159, %s156, 7
        %s161 = smul.addr %s158, 16
        %s162 = sadd.s32 %s160, %s161
        %s163 = smul.addr %s162, 8
        %s164 = scalar_lea.vmem %s1, %s163
        %s165 = smul.u32 8, %s20
        %v166 = vld [vmem:[%s132] sm:$0xff]
        %v167 = vld [vmem:[%s132 + $0x8] sm:$0xff]
        %v168 = vld [vmem:[%s132 + $0x10] sm:$0xff]
        %v169 = vld [vmem:[%s132 + $0x18] sm:$0xff]
        %v170 = vld [vmem:[%s132 + $0x20] sm:$0xff]
        %v171 = vld [vmem:[%s132 + $0x28] sm:$0xff]
        %v172 = vld [vmem:[%s132 + $0x30] sm:$0xff]
        %v173 = vld [vmem:[%s132 + $0x38] sm:$0xff]
        %v174 = vld [vmem:[%s132 + $0x40] sm:$0xff]
        %v175 = vld [vmem:[%s132 + $0x48] sm:$0xff]
        %v176 = vld [vmem:[%s132 + $0x50] sm:$0xff]
        %v177 = vld [vmem:[%s132 + $0x58] sm:$0xff]
        %v178 = vld [vmem:[%s132 + $0x60] sm:$0xff]
        %v179 = vld [vmem:[%s132 + $0x68] sm:$0xff]
        %v180 = vld [vmem:[%s132 + $0x70] sm:$0xff]
        %v181 = vld [vmem:[%s132 + $0x78] sm:$0xff]
        %vm182 = vcmask 64512
        %v183 = vsel %vm182, %v166, -inf
        %v184 = vsel %vm182, %v167, -inf
        %v185 = vmax.f32 %v183, %v184
        %v186 = vsel %vm182, %v168, -inf
        %v187 = vsel %vm182, %v169, -inf
        %v188 = vmax.f32 %v186, %v187
        %v189 = vsel %vm182, %v170, -inf
        %v190 = vsel %vm182, %v171, -inf
        %v191 = vmax.f32 %v189, %v190
        %v192 = vsel %vm182, %v172, -inf
        %v193 = vsel %vm182, %v173, -inf
        %v194 = vmax.f32 %v192, %v193
        %v195 = vsel %vm182, %v174, -inf
        %v196 = vsel %vm182, %v175, -inf
        %v197 = vmax.f32 %v195, %v196
        %v198 = vsel %vm182, %v176, -inf
        %v199 = vsel %vm182, %v177, -inf
        %v200 = vmax.f32 %v198, %v199
        %v201 = vsel %vm182, %v178, -inf
        %v202 = vsel %vm182, %v179, -inf
        %v203 = vmax.f32 %v201, %v202
        %v204 = vsel %vm182, %v180, -inf
        %v205 = vsel %vm182, %v181, -inf
        %v206 = vmax.f32 %v204, %v205
        %v207 = vsel %vm182, %v166, 0.0
        %v208 = vsel %vm182, %v167, 0.0
        %v209 = vadd.f32 %v207, %v208
        %v210 = vsel %vm182, %v168, 0.0
        %v211 = vsel %vm182, %v169, 0.0
        %v212 = vadd.f32 %v210, %v211
        %v213 = vsel %vm182, %v170, 0.0
        %v214 = vsel %vm182, %v171, 0.0
        %v215 = vadd.f32 %v213, %v214
        %v216 = vsel %vm182, %v172, 0.0
        %v217 = vsel %vm182, %v173, 0.0
        %v218 = vadd.f32 %v216, %v217
        %v219 = vsel %vm182, %v174, 0.0
        %v220 = vsel %vm182, %v175, 0.0
        %v221 = vadd.f32 %v219, %v220
        %v222 = vsel %vm182, %v176, 0.0
        %v223 = vsel %vm182, %v177, 0.0
        %v224 = vadd.f32 %v222, %v223
        %v225 = vsel %vm182, %v178, 0.0
        %v226 = vsel %vm182, %v179, 0.0
        %v227 = vadd.f32 %v225, %v226
        %v228 = vsel %vm182, %v180, 0.0
        %v229 = vsel %vm182, %v181, 0.0
        %v230 = vadd.f32 %v228, %v229
        %239 = vrot.lane.b32.xlu0 %v185, 124
        %v240 = vpop.permute.xlu0 %239
        %241 = vrot.lane.b32.xlu0 %v188, 124
        %v242 = vpop.permute.xlu0 %241
        %243 = vrot.lane.b32.xlu0 %v191, 124
        %v244 = vpop.permute.xlu0 %243
        %245 = vrot.lane.b32.xlu0 %v194, 124
        %v246 = vpop.permute.xlu0 %245
        %247 = vrot.lane.b32.xlu0 %v197, 124
        %v248 = vpop.permute.xlu0 %247
        %249 = vrot.lane.b32.xlu0 %v200, 124
        %v250 = vpop.permute.xlu0 %249
        %251 = vrot.lane.b32.xlu0 %v203, 124
        %v252 = vpop.permute.xlu0 %251
        %253 = vrot.lane.b32.xlu0 %v206, 124
        %v254 = vpop.permute.xlu0 %253
        %v263 = vmax.f32 %v185, %v240
        %v264 = vmax.f32 %v188, %v242
        %v265 = vmax.f32 %v191, %v244
        %v266 = vmax.f32 %v194, %v246
        %v267 = vmax.f32 %v197, %v248
        %v268 = vmax.f32 %v200, %v250
        %v269 = vmax.f32 %v203, %v252
        %v270 = vmax.f32 %v206, %v254
        %279 = vrot.lane.b32.xlu0 %v209, 124
        %v280 = vpop.permute.xlu0 %279
        %281 = vrot.lane.b32.xlu0 %v212, 124
        %v282 = vpop.permute.xlu0 %281
        %283 = vrot.lane.b32.xlu0 %v215, 124
        %v284 = vpop.permute.xlu0 %283
        %285 = vrot.lane.b32.xlu0 %v218, 124
        %v286 = vpop.permute.xlu0 %285
        %287 = vrot.lane.b32.xlu0 %v221, 124
        %v288 = vpop.permute.xlu0 %287
        %289 = vrot.lane.b32.xlu0 %v224, 124
        %v290 = vpop.permute.xlu0 %289
        %291 = vrot.lane.b32.xlu0 %v227, 124
        %v292 = vpop.permute.xlu0 %291
        %293 = vrot.lane.b32.xlu0 %v230, 124
        %v294 = vpop.permute.xlu0 %293
        %v303 = vadd.f32 %v209, %v280
        %v304 = vadd.f32 %v212, %v282
        %v305 = vadd.f32 %v215, %v284
        %v306 = vadd.f32 %v218, %v286
        %v307 = vadd.f32 %v221, %v288
        %v308 = vadd.f32 %v224, %v290
        %v309 = vadd.f32 %v227, %v292
        %v310 = vadd.f32 %v230, %v294
        %vm311 = vcmask 31744
        %312 = vst.msk [vmem:[%s164] sm:$0xff] %vm311, %v263
        %313 = vst.msk [vmem:[%s164 + $0x8] sm:$0xff] %vm311, %v264
        %314 = vst.msk [vmem:[%s164 + $0x10] sm:$0xff] %vm311, %v265
        %315 = vst.msk [vmem:[%s164 + $0x18] sm:$0xff] %vm311, %v266
        %316 = vst.msk [vmem:[%s164 + $0x20] sm:$0xff] %vm311, %v267
        %317 = vst.msk [vmem:[%s164 + $0x28] sm:$0xff] %vm311, %v268
        %318 = vst.msk [vmem:[%s164 + $0x30] sm:$0xff] %vm311, %v269
        %319 = vst.msk [vmem:[%s164 + $0x38] sm:$0xff] %vm311, %v270
        %v320 = vmul.f32 %v303, 0.25
        %v321 = vmul.f32 %v304, 0.25
        %v322 = vmul.f32 %v305, 0.25
        %v323 = vmul.f32 %v306, 0.25
        %v324 = vmul.f32 %v307, 0.25
        %v325 = vmul.f32 %v308, 0.25
        %v326 = vmul.f32 %v309, 0.25
        %v327 = vmul.f32 %v310, 0.25
        %s328 = scalar_lea.vmem %s164, 64
        %329 = vst.msk [vmem:[%s328] sm:$0xff] %vm311, %v320
        %330 = vst.msk [vmem:[%s328 + $0x8] sm:$0xff] %vm311, %v321
        %331 = vst.msk [vmem:[%s328 + $0x10] sm:$0xff] %vm311, %v322
        %332 = vst.msk [vmem:[%s328 + $0x18] sm:$0xff] %vm311, %v323
        %333 = vst.msk [vmem:[%s328 + $0x20] sm:$0xff] %vm311, %v324
        %334 = vst.msk [vmem:[%s328 + $0x28] sm:$0xff] %vm311, %v325
        %335 = vst.msk [vmem:[%s328 + $0x30] sm:$0xff] %vm311, %v326
        %336 = vst.msk [vmem:[%s328 + $0x38] sm:$0xff] %vm311, %v327
        %s337 = smul.u32 8, %s20
        %p338 = scmp.lt.s32.totalorder %s19, 1
        %s339 = scalar_select %p338, %s19, 1
        %p340 = scmp.lt.s32.totalorder %s337, 7
        %s341 = scalar_select %p340, %s337, 7
        %s342 = smul.addr %s339, 16
        %s343 = sadd.s32 %s341, %s342
        %s344 = smul.addr %s343, 8
        %s345 = scalar_lea.vmem %s1, %s344
        // Predicated region
        $region29: #{tpu_custom_call.1} parent=23 // pred_check
          %p346 = pneg %p75
        $region30: #{tpu_custom_call.1} parent=23 // pred_check_branch
          %348 = sbr.rel (%p346) target = $region32
        $region31: #{tpu_custom_call.1} parent=23 // pred_region
          %s349 = smul.u32 8, %s20
        $region32: #{tpu_custom_call.1} parent=23 // pred_fallthru
          _
      $region24: #{tpu_custom_call.1} parent=5 // pred_fallthru
        _
      %p350 = scmp.le.s32.totalorder 2, %s10
      // Predicated region
      $region33: #{tpu_custom_call.1} parent=5 // pred_check
        %p351 = pneg %p350
      $region34: #{tpu_custom_call.1} parent=5 // pred_check_branch
        %353 = sbr.rel (%p351) target = $region36
      $region35: #{tpu_custom_call.1} parent=5 // pred_region
        %s354 = ssub.s32 %s10, 2
        // Predicated region
        $region37: #{tpu_custom_call.1} parent=35 // pred_check
          %p355 = pneg %p81
        $region38: #{tpu_custom_call.1} parent=35 // pred_check_branch
          %357 = sbr.rel (%p355) target = $region40
        $region39: #{tpu_custom_call.1} parent=35 // pred_region
          %s358 = smul.u32 8, %s22
          %p359 = scmp.lt.s32.totalorder %s21, 1
          %s360 = scalar_select %p359, %s21, 1
          %p361 = scmp.lt.s32.totalorder %s358, 7
          %s362 = scalar_select %p361, %s358, 7
          %s363 = smul.addr %s360, 16
          %s364 = sadd.s32 %s362, %s363
          %s365 = smul.addr %s364, 8
          %s366 = scalar_lea.vmem %s1, %s365
        $region40: #{tpu_custom_call.1} parent=35 // pred_fallthru
          _
      $region36: #{tpu_custom_call.1} parent=5 // pred_fallthru
        _
    $region6: #{tpu_custom_call.1} parent=1 // loop_footer
      %s14 = sadd.s32 1, %s10
    $region7: #{tpu_custom_call.1} parent=1 // loop_footer_branch
      %9 = sbr.rel target = $region3
    $region8: #{tpu_custom_call.1} parent=1 // loop_exit
      _
    %367 = vsyncpa [#allocation3], 1
    %s368 = scalar_lea.sflag [#allocation3], 1
    %369 = vsyncpa %s368, 1

</llo_original>
